<compile_context>
chip_gen: v5e
topology: v5e:2x2
jax: 0.10.0
libtpu: 0.0.40
codegen_flags: <defaults>
</compile_context>

<pallas_src>
import functools
import math

import jax
import jax.numpy as jnp
from jax.experimental import pallas as pl
from jax.experimental.pallas import tpu as pltpu


# ---------------------------------------------------------------------------
# Activations (JAX equivalents of the module's ACT2FN table).
# ---------------------------------------------------------------------------
_SQRT_2_OVER_PI = math.sqrt(2.0 / math.pi)
_INV_SQRT_2 = 1.0 / math.sqrt(2.0)


def _gelu_erf(x):
    # torch.nn.functional.gelu / repo's `gelu`: exact erf formulation.
    return x * 0.5 * (1.0 + jax.scipy.special.erf(x * _INV_SQRT_2))


def _gelu_tanh(x):
    # `gelu_new` / OpenAI-GPT tanh approximation ("gelu_google").
    return 0.5 * x * (1.0 + jnp.tanh(_SQRT_2_OVER_PI * (x + 0.044715 * x * x * x)))


def _swish(x):
    return x * jax.nn.sigmoid(x)


ACT2FN = {
    "gelu": _gelu_erf,
    "gelu_custom": _gelu_erf,
    "relu": lambda x: jnp.maximum(x, 0.0),
    "swish": _swish,
    "gelu_google": _gelu_tanh,
}


# ---------------------------------------------------------------------------
# Tile-size heuristics.
# ---------------------------------------------------------------------------
def _round_up(n: int, m: int) -> int:
    return ((n + m - 1) // m) * m


def _choose_block_ff(ff: int, max_tile: int = 512) -> int:
    """ff tile: the full ff dim, or an exact divisor that is a multiple of 128.

    The ff axis is the reduction axis of the second matmul, so ragged ff tiles
    would accumulate garbage -- only exact divisors are allowed.
    """
    if ff <= max_tile:
        return ff
    for t in range(max_tile, 127, -128):
        if ff % t == 0:
            return t
    return ff


def _choose_block_rows(rows: int, hidden: int, block_ff: int, x_dtype, w_dtype,
                       budget_bytes: int = 20 * 1024 * 1024,
                       max_rows: int = 1024) -> int:
    """Largest row tile that fits a conservative VMEM budget."""
    in_b = jnp.dtype(x_dtype).itemsize
    w_b = jnp.dtype(w_dtype).itemsize
    # Weight/bias tiles (double-buffered by the pipeline).
    fixed = 2 * w_b * (hidden * block_ff + block_ff * hidden + block_ff + hidden)
    # Per-row bytes: x & out tiles (double-buffered) + f32 accumulator
    # + f32 intermediate activation of width block_ff.
    per_row = 4 * in_b * hidden + 4 * hidden + 4 * block_ff
    avail = max(budget_bytes - fixed, 0)
    gran = 16 if in_b < 4 else 8                 # bf16 sublane packing
    bm = max(gran, (avail // max(per_row, 1)) // gran * gran)
    bm = min(bm, max_rows, _round_up(rows, gran))
    return int(bm)


# ---------------------------------------------------------------------------
# Kernels.
# ---------------------------------------------------------------------------
def _ffn_kernel_single(x_ref, w1_ref, b1_ref, w2_ref, b2_ref, o_ref, *, act):
    """ff fits in one tile: fully fused single pass, no scratch accumulator."""
    h = jnp.dot(x_ref[...], w1_ref[...], preferred_element_type=jnp.float32)
    h = h + b1_ref[...].astype(jnp.float32)
    # TODO(synk): nn.Dropout(fw_dropout) omitted -- eval-mode forward (identity);
    # training-mode dropout would need pltpu.prng_seed / prng_random_bits.
    h = act(h)
    out = jnp.dot(h.astype(w2_ref.dtype), w2_ref[...],
                  preferred_element_type=jnp.float32)
    o_ref[...] = (out + b2_ref[...].astype(jnp.float32)).astype(o_ref.dtype)


def _ffn_kernel_multi(x_ref, w1_ref, b1_ref, w2_ref, b2_ref, o_ref, acc_ref, *, act):
    """ff tiled: accumulate partial second projection over ff tiles."""
    f = pl.program_id(1)

    @pl.when(f == 0)
    def _init():
        acc_ref[...] = jnp.zeros_like(acc_ref)

    # First projection on this ff tile: (bm, hidden) @ (hidden, bf) -> f32.
    h = jnp.dot(x_ref[...], w1_ref[...], preferred_element_type=jnp.float32)
    h = h + b1_ref[...].astype(jnp.float32)
    # TODO(synk): dropout omitted (eval-mode identity), see note above.
    h = act(h)

    # Partial second projection, accumulated over ff tiles.
    acc_ref[...] += jnp.dot(h.astype(w2_ref.dtype), w2_ref[...],
                            preferred_element_type=jnp.float32)

    @pl.when(f == pl.num_programs(1) - 1)
    def _finalize():
        o_ref[...] = (acc_ref[...] + b2_ref[...].astype(jnp.float32)).astype(o_ref.dtype)


# ---------------------------------------------------------------------------
# Wrapper.
# ---------------------------------------------------------------------------
def position_wise_feed_forward(x, w1, b1, w2, b2, *, hidden_act="gelu_google",
                               block_rows=None, block_ff=None,
                               vmem_limit_bytes=32 * 1024 * 1024):
    """out = act(x @ w1 + b1) @ w2 + b2   (eval-mode forward, dropout == id)."""
    orig_shape = x.shape
    hidden = orig_shape[-1]
    ff = w1.shape[1]
    assert w1.shape == (hidden, ff)
    assert w2.shape == (ff, hidden)
    rows = int(math.prod(orig_shape[:-1]))
    x2 = x.reshape(rows, hidden)

    act = ACT2FN[hidden_act]

    if block_ff is None:
        block_ff = _choose_block_ff(ff)
    if block_rows is None:
        block_rows = _choose_block_rows(rows, hidden, block_ff, x.dtype, w1.dtype)

    ff_tiles = ff // block_ff
    row_tiles = pl.cdiv(rows, block_rows)

    in_bytes = (x2.size * x2.dtype.itemsize + w1.size * w1.dtype.itemsize +
                b1.size * b1.dtype.itemsize + w2.size * w2.dtype.itemsize +
                b2.size * b2.dtype.itemsize)
    cost = pl.CostEstimate(
        flops=4 * rows * hidden * ff,              # two matmuls
        transcendentals=rows * ff,                 # activation on the ff width
        bytes_accessed=in_bytes + rows * hidden * x2.dtype.itemsize,
    )

    b1_2d = b1.reshape(1, ff)
    b2_2d = b2.reshape(1, hidden)

    if ff_tiles == 1:
        out = pl.pallas_call(
            functools.partial(_ffn_kernel_single, act=act),
            out_shape=jax.ShapeDtypeStruct((rows, hidden), x.dtype),
            grid=(row_tiles,),
            in_specs=[
                pl.BlockSpec((block_rows, hidden), lambda r: (r, 0)),   # x
                pl.BlockSpec((hidden, ff), lambda r: (0, 0)),           # W1
                pl.BlockSpec((1, ff), lambda r: (0, 0)),                # b1
                pl.BlockSpec((ff, hidden), lambda r: (0, 0)),           # W2
                pl.BlockSpec((1, hidden), lambda r: (0, 0)),            # b2
            ],
            out_specs=pl.BlockSpec((block_rows, hidden), lambda r: (r, 0)),
            compiler_params=pltpu.CompilerParams(
                dimension_semantics=("parallel",),
                vmem_limit_bytes=vmem_limit_bytes,
            ),
            cost_estimate=cost,
        )(x2, w1, b1_2d, w2, b2_2d)
    else:
        out = pl.pallas_call(
            functools.partial(_ffn_kernel_multi, act=act),
            out_shape=jax.ShapeDtypeStruct((rows, hidden), x.dtype),
            grid=(row_tiles, ff_tiles),
            in_specs=[
                pl.BlockSpec((block_rows, hidden), lambda r, f: (r, 0)),   # x
                pl.BlockSpec((hidden, block_ff), lambda r, f: (0, f)),     # W1
                pl.BlockSpec((1, block_ff), lambda r, f: (0, f)),          # b1
                pl.BlockSpec((block_ff, hidden), lambda r, f: (f, 0)),     # W2
                pl.BlockSpec((1, hidden), lambda r, f: (0, 0)),            # b2
            ],
            out_specs=pl.BlockSpec((block_rows, hidden), lambda r, f: (r, 0)),
            scratch_shapes=[pltpu.VMEM((block_rows, hidden), jnp.float32)],
            compiler_params=pltpu.CompilerParams(
                dimension_semantics=("parallel", "arbitrary"),
                vmem_limit_bytes=vmem_limit_bytes,
            ),
            cost_estimate=cost,
        )(x2, w1, b1_2d, w2, b2_2d)

    return out.reshape(orig_shape)


def position_wise_feed_forward_ref(x, w1, b1, w2, b2, hidden_act="gelu_google"):
    """Pure-JAX reference matching the PyTorch eval-mode forward."""
    act = ACT2FN[hidden_act]
    hi = jax.lax.Precision.HIGHEST
    xf = x.astype(jnp.float32)
    h = act(jnp.dot(xf, w1.astype(jnp.float32), precision=hi) + b1.astype(jnp.float32))
    out = jnp.dot(h, w2.astype(jnp.float32), precision=hi) + b2.astype(jnp.float32)
    return out.astype(x.dtype)


if __name__ == "__main__":
    hidden, ff = 32, 64          # hparams.hidden_size, hparams.hidden_ff
    batch, seq = 2, 8

    key = jax.random.PRNGKey(0)
    kx, kw1, kb1, kw2, kb2 = jax.random.split(key, 5)

    x = jax.random.normal(kx, (batch, seq, hidden), dtype=jnp.float32)
    # nn.Linear default init: U(-1/sqrt(fan_in), 1/sqrt(fan_in)).
    lim1 = 1.0 / math.sqrt(hidden)
    w1 = jax.random.uniform(kw1, (hidden, ff), jnp.float32, -lim1, lim1)
    b1 = jax.random.uniform(kb1, (ff,), jnp.float32, -lim1, lim1)
    lim2 = 1.0 / math.sqrt(ff)
    w2 = jax.random.uniform(kw2, (ff, hidden), jnp.float32, -lim2, lim2)
    b2 = jax.random.uniform(kb2, (hidden,), jnp.float32, -lim2, lim2)

    out = position_wise_feed_forward(x, w1, b1, w2, b2)
    out = jax.block_until_ready(out)

    ref = position_wise_feed_forward_ref(x, w1, b1, w2, b2)
    assert out.shape == x.shape
    # Tolerance covers possible MXU f32-pass precision differences vs XLA.
    assert jnp.allclose(out, ref, atol=5e-3, rtol=5e-3), "mismatch vs reference"

    # Also exercise the ff-tiled (multi-step reduction) path at small shapes.
    out2 = position_wise_feed_forward(x, w1, b1, w2, b2, block_ff=32, block_rows=8)
    out2 = jax.block_until_ready(out2)
    assert jnp.allclose(out2, ref, atol=5e-3, rtol=5e-3), "mismatch (tiled path)"

    print("KERNEL_OK")
</pallas_src>

<mosaic_0001>
module attributes {stable_mosaic.version = 11 : i64} {
  func.func @_ffn_kernel_single(%arg0: i32, %arg1: memref<16x32xf32, #tpu.memory_space<vmem>>, %arg2: memref<32x64xf32, #tpu.memory_space<vmem>>, %arg3: memref<1x64xf32, #tpu.memory_space<vmem>>, %arg4: memref<64x32xf32, #tpu.memory_space<vmem>>, %arg5: memref<1x32xf32, #tpu.memory_space<vmem>>, %arg6: memref<16x32xf32, #tpu.memory_space<vmem>>) attributes {dimension_semantics = [#tpu.dimension_semantics<parallel>], iteration_bounds = array<i64: 1>, scalar_prefetch = 0 : i64, scratch_operands = 0 : i64, tpu.core_type = #tpu.core_type<tc>, window_params = [{transform_indices = @transform_0, window_bounds = array<i64: 16, 32>}, {pipeline_mode = #tpu.pipeline_mode<synchronous>, transform_indices = @transform_1, window_bounds = array<i64: 32, 64>}, {pipeline_mode = #tpu.pipeline_mode<synchronous>, transform_indices = @transform_2, window_bounds = array<i64: 1, 64>}, {pipeline_mode = #tpu.pipeline_mode<synchronous>, transform_indices = @transform_3, window_bounds = array<i64: 64, 32>}, {pipeline_mode = #tpu.pipeline_mode<synchronous>, transform_indices = @transform_4, window_bounds = array<i64: 1, 32>}, {transform_indices = @transform_5, window_bounds = array<i64: 16, 32>}]} {
    %c0 = arith.constant 0 : index
    %c0_0 = arith.constant 0 : index
    %0 = vector.load %arg1[%c0, %c0_0] : memref<16x32xf32, #tpu.memory_space<vmem>>, vector<16x32xf32>
    %c0_1 = arith.constant 0 : index
    %c0_2 = arith.constant 0 : index
    %1 = vector.load %arg2[%c0_1, %c0_2] : memref<32x64xf32, #tpu.memory_space<vmem>>, vector<32x64xf32>
    %cst = arith.constant dense<0.000000e+00> : vector<16x64xf32>
    %2 = tpu.matmul %0, %1, %cst {dimension_numbers = #tpu.dot_dimension_numbers<[1], [0], [0], [1], [0, 0, 1, 1], [], []>} : vector<16x32xf32>, vector<32x64xf32>, vector<16x64xf32> -> vector<16x64xf32>
    %c0_3 = arith.constant 0 : index
    %c0_4 = arith.constant 0 : index
    %3 = vector.load %arg3[%c0_3, %c0_4] : memref<1x64xf32, #tpu.memory_space<vmem>>, vector<1x64xf32>
    %4 = vector.broadcast %3 : vector<1x64xf32> to vector<16x64xf32>
    %5 = arith.addf %2, %4 : vector<16x64xf32>
    %cst_5 = arith.constant 5.000000e-01 : f32
    %6 = vector.broadcast %cst_5 : f32 to vector<16x64xf32>
    %7 = arith.mulf %6, %5 : vector<16x64xf32>
    %cst_6 = arith.constant 4.471500e-02 : f32
    %8 = vector.broadcast %cst_6 : f32 to vector<16x64xf32>
    %9 = arith.mulf %8, %5 : vector<16x64xf32>
    %10 = arith.mulf %9, %5 : vector<16x64xf32>
    %11 = arith.mulf %10, %5 : vector<16x64xf32>
    %12 = arith.addf %5, %11 : vector<16x64xf32>
    %cst_7 = arith.constant 0.797884583 : f32
    %13 = vector.broadcast %cst_7 : f32 to vector<16x64xf32>
    %14 = arith.mulf %13, %12 : vector<16x64xf32>
    %15 = math.tanh %14 : vector<16x64xf32>
    %cst_8 = arith.constant 1.000000e+00 : f32
    %16 = vector.broadcast %cst_8 : f32 to vector<16x64xf32>
    %17 = arith.addf %16, %15 : vector<16x64xf32>
    %18 = arith.mulf %7, %17 : vector<16x64xf32>
    %c0_9 = arith.constant 0 : index
    %c0_10 = arith.constant 0 : index
    %19 = vector.load %arg4[%c0_9, %c0_10] : memref<64x32xf32, #tpu.memory_space<vmem>>, vector<64x32xf32>
    %cst_11 = arith.constant dense<0.000000e+00> : vector<16x32xf32>
    %20 = tpu.matmul %18, %19, %cst_11 {dimension_numbers = #tpu.dot_dimension_numbers<[1], [0], [0], [1], [0, 0, 1, 1], [], []>} : vector<16x64xf32>, vector<64x32xf32>, vector<16x32xf32> -> vector<16x32xf32>
    %c0_12 = arith.constant 0 : index
    %c0_13 = arith.constant 0 : index
    %21 = vector.load %arg5[%c0_12, %c0_13] : memref<1x32xf32, #tpu.memory_space<vmem>>, vector<1x32xf32>
    %22 = vector.broadcast %21 : vector<1x32xf32> to vector<16x32xf32>
    %23 = arith.addf %20, %22 : vector<16x32xf32>
    %c0_14 = arith.constant 0 : index
    %c0_15 = arith.constant 0 : index
    %24 = vector.load %arg6[%c0_14, %c0_15] : memref<16x32xf32, #tpu.memory_space<vmem>>, vector<16x32xf32>
    tpu.vector_store %arg6[%c0_14, %c0_15], %23 {strides = array<i32>} : memref<16x32xf32, #tpu.memory_space<vmem>>, vector<16x32xf32>,
    return
  }
  func.func @transform_0(%arg0: i32) -> (i32, i32) {
    %c0_i32 = arith.constant 0 : i32
    %c0_i32_0 = arith.constant 0 : i32
    return %arg0, %c0_i32 : i32, i32
  }
  func.func @transform_1(%arg0: i32) -> (i32, i32) {
    %c0_i32 = arith.constant 0 : i32
    %c0_i32_0 = arith.constant 0 : i32
    %c0_i32_1 = arith.constant 0 : i32
    return %c0_i32, %c0_i32_0 : i32, i32
  }
  func.func @transform_2(%arg0: i32) -> (i32, i32) {
    %c0_i32 = arith.constant 0 : i32
    %c0_i32_0 = arith.constant 0 : i32
    %c0_i32_1 = arith.constant 0 : i32
    return %c0_i32, %c0_i32_0 : i32, i32
  }
  func.func @transform_3(%arg0: i32) -> (i32, i32) {
    %c0_i32 = arith.constant 0 : i32
    %c0_i32_0 = arith.constant 0 : i32
    %c0_i32_1 = arith.constant 0 : i32
    return %c0_i32, %c0_i32_0 : i32, i32
  }
  func.func @transform_4(%arg0: i32) -> (i32, i32) {
    %c0_i32 = arith.constant 0 : i32
    %c0_i32_0 = arith.constant 0 : i32
    %c0_i32_1 = arith.constant 0 : i32
    return %c0_i32, %c0_i32_0 : i32, i32
  }
  func.func @transform_5(%arg0: i32) -> (i32, i32) {
    %c0_i32 = arith.constant 0 : i32
    %c0_i32_0 = arith.constant 0 : i32
    return %arg0, %c0_i32 : i32, i32
  }
}

</mosaic_0001>

<llo_original>
// kernel: tpu_custom_call.1
$region0: #{tpu_custom_call.1}
  #allocation0 [shape = 'u32[]', space=smem, size = 0x4, offset = 0x4, fixed_abs, tag = 'smem constant byte address 0x4 - core index']
  #allocation1 [shape = 'u32[72,128]{1,0:T(1,128)}', space=vmem, size = 0x9000, scoped, tag = 'internal scratch']
  %s0 = inlined_call_operand.vmem [shape: f32[16,32], index: 0, kind: input, shape index: {}]
  %s1 = inlined_call_operand.vmem [shape: f32[32,64], index: 1, kind: input, shape index: {}]
  %s2 = inlined_call_operand.vmem [shape: f32[1,64], index: 2, kind: input, shape index: {}]
  %s3 = inlined_call_operand.vmem [shape: f32[64,32], index: 3, kind: input, shape index: {}]
  %s4 = inlined_call_operand.vmem [shape: f32[1,32], index: 4, kind: input, shape index: {}]
  %s5 = inlined_call_operand.hbm [shape: f32[16,32], index: 5, kind: output, shape index: {}]
  %s6 = sld [smem:[#allocation0]]
  $region30: #{tpu_custom_call.1} parent=0
    _
  %s8 = ssub.s32 1, %s6
  %s9 = scalar_select 0, %s8, %s6
  $region1: #{tpu_custom_call.1} parent=0
    #allocation2 [shape = 'u8[8192]{0}', space=vmem, size = 0x2000, scoped, tag = 'output window, operand 0, single buffered']
    #allocation3 [shape = 's32[1]{0}', space=sflag, size = 0x4, scoped, tag = 'scoped memory for tpu_custom_call.1']
    %10 = vsyncpa [#allocation3], 0
    // Predicated region
    $region2: #{tpu_custom_call.1} parent=1 // pred_check
      _
    $region3: #{tpu_custom_call.1} parent=1 // pred_check_branch
      %12 = sbr.rel (0) target = $region5
    $region4: #{tpu_custom_call.1} parent=1 // pred_region
      _
    $region5: #{tpu_custom_call.1} parent=1 // pred_fallthru
      _
    // Predicated region
    $region6: #{tpu_custom_call.1} parent=1 // pred_check
      _
    $region7: #{tpu_custom_call.1} parent=1 // pred_check_branch
      %14 = sbr.rel (0) target = $region9
    $region8: #{tpu_custom_call.1} parent=1 // pred_region
      _
    $region9: #{tpu_custom_call.1} parent=1 // pred_fallthru
      _
    // Predicated region
    $region10: #{tpu_custom_call.1} parent=1 // pred_check
      _
    $region11: #{tpu_custom_call.1} parent=1 // pred_check_branch
      %16 = sbr.rel (0) target = $region13
    $region12: #{tpu_custom_call.1} parent=1 // pred_region
      _
    $region13: #{tpu_custom_call.1} parent=1 // pred_fallthru
      _
    // Predicated region
    $region14: #{tpu_custom_call.1} parent=1 // pred_check
      _
    $region15: #{tpu_custom_call.1} parent=1 // pred_check_branch
      %18 = sbr.rel (0) target = $region17
    $region16: #{tpu_custom_call.1} parent=1 // pred_region
      _
    $region17: #{tpu_custom_call.1} parent=1 // pred_fallthru
      _
    // Predicated region
    $region18: #{tpu_custom_call.1} parent=1 // pred_check
      _
    $region19: #{tpu_custom_call.1} parent=1 // pred_check_branch
      %20 = sbr.rel (0) target = $region21
    $region20: #{tpu_custom_call.1} parent=1 // pred_region
      _
    $region21: #{tpu_custom_call.1} parent=1 // pred_fallthru
      _
    %v21 = vld [vmem:[%s0] sm:$0xff]
    %v22 = vld [vmem:[%s0 + $0x8] sm:$0xff]
    %v23 = vld [vmem:[%s1] sm:$0xff]
    %v24 = vld [vmem:[%s1 + $0x8] sm:$0xff]
    %v25 = vld [vmem:[%s1 + $0x10] sm:$0xff]
    %v26 = vld [vmem:[%s1 + $0x18] sm:$0xff]
    %v27 = vld [vmem:[%s2] sm:$0x1]
    %v29 = vperm.slane %v27, 0
    %vm31 = vcmask 261120
    %v33 = vsel %vm31, %v21, 0
    %v36 = vsel %vm31, %v22, 0
    %38 = vmatpush.msra.mxu0 0.0
    %39 = vmatpush.msra.mxu0 0.0
    %40 = vmatpush.msra.mxu0 0.0
    %41 = vmatpush.msra.mxu0 0.0
    %42 = vmatpush.msra.mxu0 0.0
    %43 = vmatpush.msra.mxu0 0.0
    %44 = vmatpush.msra.mxu0 0.0
    %45 = vmatpush.msra.mxu0 0.0
    %46 = vmatpush.msra.mxu0 0.0
    %47 = vmatpush.msra.mxu0 0.0
    %48 = vmatpush.msra.mxu0 0.0
    %49 = vmatpush.msra.mxu0 0.0
    %50 = vmatpush.msra.mxu0 %v26
    %51 = vmatpush.msra.mxu0 %v25
    %52 = vmatpush.msra.mxu0 %v24
    %53 = vmatpush.msra.mxu0 %v23
    %54 = vmatmul.f32.gmra.mxu0 %v33
    %v55 = vpop.f32.mrf.mxu0
    %v56 = vadd.f32 %v29, %v55
    %57 = vmatmul.f32.gmra.mxu0 %v36
    %v58 = vpop.f32.mrf.mxu0
    %v59 = vadd.f32 %v29, %v58
    %60 = vdwg.mxu0
    %v61 = vmul.f32 %v56, 0.5
    %v62 = vmul.f32 %v59, 0.5
    %v63 = vmul.f32 %v56, 0.044715
    %v64 = vmul.f32 %v59, 0.044715
    %v65 = vmul.f32 %v63, %v56
    %v66 = vmul.f32 %v64, %v59
    %v67 = vmul.f32 %v65, %v56
    %v68 = vmul.f32 %v66, %v59
    %v69 = vadd.f32 %v56, %v67
    %v70 = vadd.f32 %v59, %v68
    %v71 = vmul.f32 %v69, 0.7978846
    %v72 = vmul.f32 %v70, 0.7978846
    %v73 = vtanh.pop %v71
    %v74 = vtanh.pop %v72
    %v75 = vadd.f32 %v73, 1.0
    %v76 = vadd.f32 %v74, 1.0
    %v77 = vmul.f32 %v61, %v75
    %v78 = vmul.f32 %v62, %v76
    %v79 = vld [vmem:[%s3] sm:$0xff]
    %v80 = vld [vmem:[%s3 + $0x8] sm:$0xff]
    %v81 = vld [vmem:[%s3 + $0x10] sm:$0xff]
    %v82 = vld [vmem:[%s3 + $0x18] sm:$0xff]
    %v83 = vld [vmem:[%s3 + $0x20] sm:$0xff]
    %v84 = vld [vmem:[%s3 + $0x28] sm:$0xff]
    %v85 = vld [vmem:[%s3 + $0x30] sm:$0xff]
    %v86 = vld [vmem:[%s3 + $0x38] sm:$0xff]
    %v87 = vld [vmem:[%s4] sm:$0x1]
    %v89 = vperm.slane %v87, 0
    %vm91 = vcmask 523264
    %v93 = vsel %vm91, %v77, 0
    %v96 = vsel %vm91, %v78, 0
    %98 = vmatpush.msra.mxu0 0.0
    %99 = vmatpush.msra.mxu0 0.0
    %100 = vmatpush.msra.mxu0 0.0
    %101 = vmatpush.msra.mxu0 0.0
    %102 = vmatpush.msra.mxu0 0.0
    %103 = vmatpush.msra.mxu0 0.0
    %104 = vmatpush.msra.mxu0 0.0
    %105 = vmatpush.msra.mxu0 0.0
    %106 = vmatpush.msra.mxu0 %v86
    %107 = vmatpush.msra.mxu0 %v85
    %108 = vmatpush.msra.mxu0 %v84
    %109 = vmatpush.msra.mxu0 %v83
    %110 = vmatpush.msra.mxu0 %v82
    %111 = vmatpush.msra.mxu0 %v81
    %112 = vmatpush.msra.mxu0 %v80
    %113 = vmatpush.msra.mxu0 %v79
    %114 = vmatmul.f32.gmra.mxu0 %v93
    %v115 = vpop.f32.mrf.mxu0
    %v116 = vadd.f32 %v89, %v115
    %117 = vmatmul.f32.gmra.mxu0 %v96
    %v118 = vpop.f32.mrf.mxu0
    %v119 = vadd.f32 %v89, %v118
    %120 = vdwg.mxu0
    %121 = vst.msk [vmem:[#allocation2] sm:$0xff] %vm31, %v116
    %122 = vst.msk [vmem:[#allocation2 + $0x8] sm:$0xff] %vm31, %v119
    // Predicated region
    $region22: #{tpu_custom_call.1} parent=1 // pred_check
      _
    $region23: #{tpu_custom_call.1} parent=1 // pred_check_branch
      %124 = sbr.rel (0) target = $region25
    $region24: #{tpu_custom_call.1} parent=1 // pred_region
      %126 = vsyncadd [#allocation3], 0
      %s127 = sshll.u32 [#allocation2], 4
      %s128 = int_to_ptr.vmem [resolvable:$true] %s127
      %s129 = sshll.u32 %s5, 4
      %s130 = int_to_ptr.hbm [resolvable:$true] %s129
      %135 = dma.vmem_to_hbm [thread:$0]  %s128, 256, %s130, [#allocation3], 128, 128, 8
    $region25: #{tpu_custom_call.1} parent=1 // pred_fallthru
      _
    // Predicated region
    $region26: #{tpu_custom_call.1} parent=1 // pred_check
      _
    $region27: #{tpu_custom_call.1} parent=1 // pred_check_branch
      %137 = sbr.rel (0) target = $region29
    $region28: #{tpu_custom_call.1} parent=1 // pred_region
      %139 = dma.done [#allocation3], 256
    $region29: #{tpu_custom_call.1} parent=1 // pred_fallthru
      _
    %140 = vsyncpa [#allocation3], 1

</llo_original>
